<compile_context>
chip_gen: v7x
topology: tpu7x:2x2x1
jax: 0.10.0
libtpu: 0.0.40
codegen_flags: <defaults>
</compile_context>

<pallas_src>
import functools

import jax
import jax.numpy as jnp
import numpy as np
from jax.experimental import pallas as pl
from jax.experimental.pallas import tpu as pltpu


def _fused_stack_kernel(x_ref, w1_ref, b1_ref, w2_ref, b2_ref, o_ref,
                        xp_ref, yp_ref, *, Bt, H, W, Cin, Cout):
    """One grid step = Bt batch images; conv1->ReLU->conv2->ReLU all in VMEM.

    x_ref : (Bt, H, W*Cin)          W-folded (channels-in-lanes) input, unpadded
    w1_ref: (3*W*Cin,  W*Cout)      dy-stacked block-banded conv1 weights (halo-free)
    b1_ref: (1, W*Cout)             conv1 bias tiled over W
    w2_ref: (3*W*Cout, W*Cout)      dy-stacked block-banded conv2 weights
    b2_ref: (1, W*Cout)
    o_ref : (Bt, H, W*Cout)         W-folded output (lane-dense last dim)
    xp_ref: VMEM (Bt*(H+2), W*Cin)  row-padded, batch-stacked conv1 input (compute dtype)
    yp_ref: VMEM (Bt*(H+2), W*Cout) row-padded, batch-stacked conv1 output
    """
    HP = H + 2
    M = Bt * HP - 2            # MXU rows; the rows spanning image gaps are discarded
    cdtype = xp_ref.dtype

    # Scatter each image into the stacked layout; its 1-row top/bottom zero halos are
    # written in the same store (keeps every grid iteration self-contained).
    zx = jnp.zeros((1, W * Cin), cdtype)
    for b in range(Bt):
        xp_ref[b * HP:(b + 1) * HP, :] = jnp.concatenate(
            [zx, x_ref[b].astype(cdtype), zx], axis=0)

    # conv1 + ReLU as ONE MXU contraction: three dy-shifted row views concatenated along
    # K (K = 3*W*Cin) against the dy-stacked weight slab.
    lhs1 = jnp.concatenate(
        [xp_ref[0:M, :], xp_ref[1:M + 1, :], xp_ref[2:M + 2, :]], axis=-1)
    acc = jnp.dot(lhs1, w1_ref[...], preferred_element_type=jnp.float32)
    y = jnp.maximum(acc + b1_ref[...], 0.0)            # f32 bias + ReLU (VPU)
    y = y.astype(cdtype)                                # single cast (bf16 fast path)

    # Scatter conv1's valid rows (+ zero halos) into the conv2 input scratch.
    zy = jnp.zeros((1, W * Cout), cdtype)
    for b in range(Bt):
        yp_ref[b * HP:(b + 1) * HP, :] = jnp.concatenate(
            [zy, y[b * HP:b * HP + H, :], zy], axis=0)

    # conv2 + ReLU, same single-contraction structure, K = 3*W*Cout.
    lhs2 = jnp.concatenate(
        [yp_ref[0:M, :], yp_ref[1:M + 1, :], yp_ref[2:M + 2, :]], axis=-1)
    acc = jnp.dot(lhs2, w2_ref[...], preferred_element_type=jnp.float32)
    z = jnp.maximum(acc + b2_ref[...], 0.0).astype(o_ref.dtype)

    # Gather each image's valid rows back out (lane-dense, W*Cout-wide stores).
    for b in range(Bt):
        o_ref[b] = z[b * HP:b * HP + H, :]


def _fold_conv3x3_weights(w_oihw, W):
    """OIHW (Co,Ci,3,3) -> (3*W*Ci, W*Co) dy-stacked, halo-free block-banded slab.

    For an UNPADDED W-folded activation xr[r, m*Ci+ci] = x_rowpad[r, m, ci] (rows padded,
    columns not), and lhs = concat_dy(xr[dy:dy+M]) along lanes:

        (lhs @ A)[r, j*Co+co] == conv3x3_same(x, w)[r_image_row, j, co]

    The 'same' column padding is folded in by dropping taps where j+dx-1 is outside [0,W).
    """
    Co, Ci, KH, KW = w_oihw.shape
    assert KH == 3 and KW == 3, "ContractingStack uses 3x3 convs"
    w_hwio = jnp.transpose(w_oihw, (2, 3, 1, 0)).astype(jnp.float32)   # (3,3,Ci,Co)
    sel = np.zeros((KW, W, W), dtype=np.float32)                       # sel[dx, m, j]
    for dx in range(KW):
        for j in range(W):
            m = j + dx - 1
            if 0 <= m < W:
                sel[dx, m, j] = 1.0
    # A[dy, m, ci, j, co] = sum_dx sel[dx, m, j] * w[dy, dx, ci, co]
    a = jnp.einsum("dmj,kdio->kmijo", jnp.asarray(sel), w_hwio)        # (3, W, Ci, W, Co)
    return a.reshape(KH * W * Ci, W * Co)


def fold_contracting_stack_params(params, W, *, compute_dtype=jnp.float32):
    """Precompute folded weight slabs / tiled biases (do this once per layer)."""
    Cout = params["w1"].shape[0]
    return {
        "w1f": _fold_conv3x3_weights(params["w1"], W).astype(compute_dtype),
        "w2f": _fold_conv3x3_weights(params["w2"], W).astype(compute_dtype),
        "b1f": jnp.tile(params["b1"].astype(jnp.float32), W).reshape(1, W * Cout),
        "b2f": jnp.tile(params["b2"].astype(jnp.float32), W).reshape(1, W * Cout),
    }


def _vmem_limit_bytes(Bt, H, W, Cin, Cout, x_item, out_item, c_item):
    """Explicit scoped-VMEM budget: 2x(double-buffered IO) + weights + scratch + temps."""
    HP = H + 2
    M = Bt * HP - 2
    io_blocks = 2 * Bt * H * W * (Cin * x_item + Cout * out_item)
    weights = 2 * (3 * W * Cin + 3 * W * Cout) * W * Cout * c_item + 2 * 2 * W * Cout * 4
    scratch = Bt * HP * W * (Cin + Cout) * c_item
    temps = M * (3 * W * (Cin + Cout) * c_item + 3 * W * Cout * 4)   # lhs1/lhs2, acc/y/z
    est = io_blocks + weights + scratch + temps
    return int(min(64 * 2 ** 20, max(16 * 2 ** 20, 2 * est)))        # cap at v7x budget


def contracting_stack_folded(x_folded, folded_params, *, Cin, Cout,
                             batch_tile=None, compute_dtype=jnp.float32,
                             out_dtype=None):
    """Native-layout forward: (N, H, W*Cin) -> (N, H, W*Cout), channels in lanes."""
    N, H, WCin = x_folded.shape
    W = WCin // Cin
    out_dtype = out_dtype or x_folded.dtype

    if batch_tile is None:
        # Keep >= 2 grid steps when possible so ("parallel",) can shard across v7x's two
        # TensorCores; on v5e/v6e (single TC) a larger batch_tile is preferable at scale.
        batch_tile = max(1, min(8, N // 2 if N >= 2 else 1))
    Bt = batch_tile

    num_steps = pl.cdiv(N, Bt)
    Npad = num_steps * Bt
    if Npad != N:
        x_folded = jnp.pad(x_folded, ((0, Npad - N), (0, 0), (0, 0)))

    kernel = functools.partial(_fused_stack_kernel,
                               Bt=Bt, H=H, W=W, Cin=Cin, Cout=Cout)

    vmem_limit = _vmem_limit_bytes(
        Bt, H, W, Cin, Cout,
        jnp.dtype(x_folded.dtype).itemsize,
        jnp.dtype(out_dtype).itemsize,
        jnp.dtype(compute_dtype).itemsize)

    out = pl.pallas_call(
        kernel,
        out_shape=jax.ShapeDtypeStruct((Npad, H, W * Cout), out_dtype),
        grid_spec=pltpu.PrefetchScalarGridSpec(
            num_scalar_prefetch=0,
            grid=(num_steps,),
            in_specs=[
                pl.BlockSpec((Bt, H, W * Cin), lambda n: (n, 0, 0)),
                # Constant-index weight/bias blocks (DMA'd once; see TODO about
                # single-buffering them when W/C grow against v7x's 64 MiB VMEM).
                pl.BlockSpec((3 * W * Cin, W * Cout), lambda n: (0, 0)),
                pl.BlockSpec((1, W * Cout), lambda n: (0, 0)),
                pl.BlockSpec((3 * W * Cout, W * Cout), lambda n: (0, 0)),
                pl.BlockSpec((1, W * Cout), lambda n: (0, 0)),
            ],
            out_specs=pl.BlockSpec((Bt, H, W * Cout), lambda n: (n, 0, 0)),
            scratch_shapes=[
                pltpu.VMEM((Bt * (H + 2), W * Cin), compute_dtype),
                pltpu.VMEM((Bt * (H + 2), W * Cout), compute_dtype),
            ],
        ),
        compiler_params=pltpu.CompilerParams(
            dimension_semantics=("parallel",),
            vmem_limit_bytes=vmem_limit),
    )(x_folded, folded_params["w1f"], folded_params["b1f"],
      folded_params["w2f"], folded_params["b2f"])

    return out[:N] if Npad != N else out


def contracting_stack_forward(x_nchw, params, *, batch_norm=False, pre_activation=False,
                              batch_tile=None, compute_dtype=jnp.float32):
    """Matches ContractingStack(in_ch, out_ch).forward(x) with default flags.

    x_nchw: (N, Cin, H, W) -> (N, Cout, H, W)
    params: w1 (Cout,Cin,3,3), b1 (Cout,), w2 (Cout,Cout,3,3), b2 (Cout,)  (PyTorch layouts)
    """
    if batch_norm or pre_activation:
        # TODO(synk): batch_norm / pre_activation branches of ContractingStack not implemented.
        raise NotImplementedError("batch_norm / pre_activation branches are not implemented")

    N, Cin, H, W = x_nchw.shape
    Cout = params["w1"].shape[0]
    folded = fold_contracting_stack_params(params, W, compute_dtype=compute_dtype)

    # NCHW -> W-folded NHWC (N, H, W*Cin).
    # TODO(synk): chain consecutive stacks directly in the folded layout via
    # contracting_stack_folded to avoid these HBM-round-trip transposes.
    x_f = jnp.transpose(x_nchw, (0, 2, 3, 1)).reshape(N, H, W * Cin)
    out_f = contracting_stack_folded(x_f, folded, Cin=Cin, Cout=Cout,
                                     batch_tile=batch_tile, compute_dtype=compute_dtype)
    # (N, H, W*Cout) -> NCHW.
    return jnp.transpose(out_f.reshape(N, H, W, Cout), (0, 3, 1, 2))


def _reference_forward(x_nchw, params):
    """Pure-JAX reference using lax.conv_general_dilated (NCHW, OIHW)."""
    dn = jax.lax.conv_dimension_numbers(x_nchw.shape, params["w1"].shape,
                                        ("NCHW", "OIHW", "NCHW"))
    y = jax.lax.conv_general_dilated(x_nchw, params["w1"], (1, 1), "SAME",
                                     dimension_numbers=dn)
    y = jax.nn.relu(y + params["b1"][None, :, None, None])
    dn2 = jax.lax.conv_dimension_numbers(y.shape, params["w2"].shape,
                                         ("NCHW", "OIHW", "NCHW"))
    y = jax.lax.conv_general_dilated(y, params["w2"], (1, 1), "SAME",
                                     dimension_numbers=dn2)
    y = jax.nn.relu(y + params["b2"][None, :, None, None])
    return y


if __name__ == "__main__":
    key = jax.random.PRNGKey(0)
    N, Cin, Cout, H, W = 8, 4, 8, 16, 16    # default batch_tile=4 -> 2 parallel grid steps

    k_x, k_w1, k_b1, k_w2, k_b2 = jax.random.split(key, 5)
    x = jax.random.normal(k_x, (N, Cin, H, W), dtype=jnp.float32)

    params = {
        "w1": jax.random.normal(k_w1, (Cout, Cin, 3, 3), dtype=jnp.float32) * 0.1,
        "b1": jax.random.normal(k_b1, (Cout,), dtype=jnp.float32) * 0.1,
        "w2": jax.random.normal(k_w2, (Cout, Cout, 3, 3), dtype=jnp.float32) * 0.1,
        "b2": jax.random.normal(k_b2, (Cout,), dtype=jnp.float32) * 0.1,
    }

    ref = jax.block_until_ready(_reference_forward(x, params))

    # Exact-math path: f32 MXU operands.
    fwd_f32 = jax.jit(functools.partial(contracting_stack_forward,
                                        compute_dtype=jnp.float32))
    out_f32 = jax.block_until_ready(fwd_f32(x, params))
    np.testing.assert_allclose(np.asarray(out_f32), np.asarray(ref),
                               rtol=1e-4, atol=1e-4)

    # Fast path: bf16 MXU operands / bf16 scratches, f32 accumulation + bias + ReLU.
    fwd_bf16 = jax.jit(functools.partial(contracting_stack_forward,
                                         compute_dtype=jnp.bfloat16))
    out_bf16 = jax.block_until_ready(fwd_bf16(x, params))
    np.testing.assert_allclose(np.asarray(out_bf16), np.asarray(ref),
                               rtol=5e-2, atol=5e-2)

    print("KERNEL_OK")
</pallas_src>

<mosaic_0001>
module attributes {stable_mosaic.version = 11 : i64} {
  func.func @_fused_stack_kernel(%arg0: i32, %arg1: memref<4x16x64xf32, #tpu.memory_space<vmem>>, %arg2: memref<192x128xf32, #tpu.memory_space<vmem>>, %arg3: memref<1x128xf32, #tpu.memory_space<vmem>>, %arg4: memref<384x128xf32, #tpu.memory_space<vmem>>, %arg5: memref<1x128xf32, #tpu.memory_space<vmem>>, %arg6: memref<4x16x128xf32, #tpu.memory_space<vmem>>, %arg7: memref<72x64xf32, #tpu.memory_space<vmem>>, %arg8: memref<72x128xf32, #tpu.memory_space<vmem>>) attributes {dimension_semantics = [#tpu.dimension_semantics<parallel>], iteration_bounds = array<i64: 2>, scalar_prefetch = 0 : i64, scratch_operands = 2 : i64, tpu.core_type = #tpu.core_type<tc>, window_params = [{transform_indices = @transform_0, window_bounds = array<i64: 4, 16, 64>}, {pipeline_mode = #tpu.pipeline_mode<synchronous>, transform_indices = @transform_1, window_bounds = array<i64: 192, 128>}, {pipeline_mode = #tpu.pipeline_mode<synchronous>, transform_indices = @transform_2, window_bounds = array<i64: 1, 128>}, {pipeline_mode = #tpu.pipeline_mode<synchronous>, transform_indices = @transform_3, window_bounds = array<i64: 384, 128>}, {pipeline_mode = #tpu.pipeline_mode<synchronous>, transform_indices = @transform_4, window_bounds = array<i64: 1, 128>}, {transform_indices = @transform_5, window_bounds = array<i64: 4, 16, 128>}]} {
    %cst = arith.constant 0.000000e+00 : f32
    %0 = vector.broadcast %cst : f32 to vector<1x64xf32>
    %c0 = arith.constant 0 : index
    %c0_0 = arith.constant 0 : index
    %c0_1 = arith.constant 0 : index
    %1 = vector.load %arg1[%c0, %c0_0, %c0_1] : memref<4x16x64xf32, #tpu.memory_space<vmem>>, vector<1x16x64xf32>
    %2 = vector.shape_cast %1 : vector<1x16x64xf32> to vector<16x64xf32>
    %3 = tpu.concatenate %0, %2, %0 in 0 : vector<1x64xf32>, vector<16x64xf32>, vector<1x64xf32> -> vector<18x64xf32>
    %c0_2 = arith.constant 0 : index
    %c0_3 = arith.constant 0 : index
    %4 = vector.load %arg7[%c0_2, %c0_3] : memref<72x64xf32, #tpu.memory_space<vmem>>, vector<18x64xf32>
    tpu.vector_store %arg7[%c0_2, %c0_3], %3 {strides = array<i32>} : memref<72x64xf32, #tpu.memory_space<vmem>>, vector<18x64xf32>,
    %c1 = arith.constant 1 : index
    %c0_4 = arith.constant 0 : index
    %c0_5 = arith.constant 0 : index
    %5 = vector.load %arg1[%c1, %c0_4, %c0_5] : memref<4x16x64xf32, #tpu.memory_space<vmem>>, vector<1x16x64xf32>
    %6 = vector.shape_cast %5 : vector<1x16x64xf32> to vector<16x64xf32>
    %7 = tpu.concatenate %0, %6, %0 in 0 : vector<1x64xf32>, vector<16x64xf32>, vector<1x64xf32> -> vector<18x64xf32>
    %c18 = arith.constant 18 : index
    %c0_6 = arith.constant 0 : index
    %8 = vector.load %arg7[%c18, %c0_6] : memref<72x64xf32, #tpu.memory_space<vmem>>, vector<18x64xf32>
    tpu.vector_store %arg7[%c18, %c0_6], %7 {strides = array<i32>} : memref<72x64xf32, #tpu.memory_space<vmem>>, vector<18x64xf32>,
    %c2 = arith.constant 2 : index
    %c0_7 = arith.constant 0 : index
    %c0_8 = arith.constant 0 : index
    %9 = vector.load %arg1[%c2, %c0_7, %c0_8] : memref<4x16x64xf32, #tpu.memory_space<vmem>>, vector<1x16x64xf32>
    %10 = vector.shape_cast %9 : vector<1x16x64xf32> to vector<16x64xf32>
    %11 = tpu.concatenate %0, %10, %0 in 0 : vector<1x64xf32>, vector<16x64xf32>, vector<1x64xf32> -> vector<18x64xf32>
    %c36 = arith.constant 36 : index
    %c0_9 = arith.constant 0 : index
    %12 = vector.load %arg7[%c36, %c0_9] : memref<72x64xf32, #tpu.memory_space<vmem>>, vector<18x64xf32>
    tpu.vector_store %arg7[%c36, %c0_9], %11 {strides = array<i32>} : memref<72x64xf32, #tpu.memory_space<vmem>>, vector<18x64xf32>,
    %c3 = arith.constant 3 : index
    %c0_10 = arith.constant 0 : index
    %c0_11 = arith.constant 0 : index
    %13 = vector.load %arg1[%c3, %c0_10, %c0_11] : memref<4x16x64xf32, #tpu.memory_space<vmem>>, vector<1x16x64xf32>
    %14 = vector.shape_cast %13 : vector<1x16x64xf32> to vector<16x64xf32>
    %15 = tpu.concatenate %0, %14, %0 in 0 : vector<1x64xf32>, vector<16x64xf32>, vector<1x64xf32> -> vector<18x64xf32>
    %c54 = arith.constant 54 : index
    %c0_12 = arith.constant 0 : index
    %16 = vector.load %arg7[%c54, %c0_12] : memref<72x64xf32, #tpu.memory_space<vmem>>, vector<18x64xf32>
    tpu.vector_store %arg7[%c54, %c0_12], %15 {strides = array<i32>} : memref<72x64xf32, #tpu.memory_space<vmem>>, vector<18x64xf32>,
    %c0_13 = arith.constant 0 : index
    %c0_14 = arith.constant 0 : index
    %17 = vector.load %arg7[%c0_13, %c0_14] : memref<72x64xf32, #tpu.memory_space<vmem>>, vector<70x64xf32>
    %c1_15 = arith.constant 1 : index
    %c0_16 = arith.constant 0 : index
    %18 = vector.load %arg7[%c1_15, %c0_16] : memref<72x64xf32, #tpu.memory_space<vmem>>, vector<70x64xf32>
    %c2_17 = arith.constant 2 : index
    %c0_18 = arith.constant 0 : index
    %19 = vector.load %arg7[%c2_17, %c0_18] : memref<72x64xf32, #tpu.memory_space<vmem>>, vector<70x64xf32>
    %20 = tpu.concatenate %17, %18, %19 in 1 : vector<70x64xf32>, vector<70x64xf32>, vector<70x64xf32> -> vector<70x192xf32>
    %c0_19 = arith.constant 0 : index
    %c0_20 = arith.constant 0 : index
    %21 = vector.load %arg2[%c0_19, %c0_20] : memref<192x128xf32, #tpu.memory_space<vmem>>, vector<192x128xf32>
    %cst_21 = arith.constant dense<0.000000e+00> : vector<70x128xf32>
    %22 = tpu.matmul %20, %21, %cst_21 {dimension_numbers = #tpu.dot_dimension_numbers<[1], [0], [0], [1], [0, 0, 1, 1], [], []>} : vector<70x192xf32>, vector<192x128xf32>, vector<70x128xf32> -> vector<70x128xf32>
    %c0_22 = arith.constant 0 : index
    %c0_23 = arith.constant 0 : index
    %23 = vector.load %arg3[%c0_22, %c0_23] : memref<1x128xf32, #tpu.memory_space<vmem>>, vector<1x128xf32>
    %24 = vector.broadcast %23 : vector<1x128xf32> to vector<70x128xf32>
    %25 = arith.addf %22, %24 : vector<70x128xf32>
    %cst_24 = arith.constant 0.000000e+00 : f32
    %26 = vector.broadcast %cst_24 : f32 to vector<70x128xf32>
    %27 = arith.maximumf %25, %26 : vector<70x128xf32>
    %cst_25 = arith.constant 0.000000e+00 : f32
    %28 = vector.broadcast %cst_25 : f32 to vector<1x128xf32>
    %29 = vector.extract_strided_slice %27 {offsets = [0, 0], sizes = [16, 128], strides = [1, 1]} : vector<70x128xf32> to vector<16x128xf32>
    %30 = tpu.concatenate %28, %29, %28 in 0 : vector<1x128xf32>, vector<16x128xf32>, vector<1x128xf32> -> vector<18x128xf32>
    %c0_26 = arith.constant 0 : index
    %c0_27 = arith.constant 0 : index
    %31 = vector.load %arg8[%c0_26, %c0_27] : memref<72x128xf32, #tpu.memory_space<vmem>>, vector<18x128xf32>
    tpu.vector_store %arg8[%c0_26, %c0_27], %30 {strides = array<i32>} : memref<72x128xf32, #tpu.memory_space<vmem>>, vector<18x128xf32>,
    %32 = vector.extract_strided_slice %27 {offsets = [18, 0], sizes = [16, 128], strides = [1, 1]} : vector<70x128xf32> to vector<16x128xf32>
    %33 = tpu.concatenate %28, %32, %28 in 0 : vector<1x128xf32>, vector<16x128xf32>, vector<1x128xf32> -> vector<18x128xf32>
    %c18_28 = arith.constant 18 : index
    %c0_29 = arith.constant 0 : index
    %34 = vector.load %arg8[%c18_28, %c0_29] : memref<72x128xf32, #tpu.memory_space<vmem>>, vector<18x128xf32>
    tpu.vector_store %arg8[%c18_28, %c0_29], %33 {strides = array<i32>} : memref<72x128xf32, #tpu.memory_space<vmem>>, vector<18x128xf32>,
    %35 = vector.extract_strided_slice %27 {offsets = [36, 0], sizes = [16, 128], strides = [1, 1]} : vector<70x128xf32> to vector<16x128xf32>
    %36 = tpu.concatenate %28, %35, %28 in 0 : vector<1x128xf32>, vector<16x128xf32>, vector<1x128xf32> -> vector<18x128xf32>
    %c36_30 = arith.constant 36 : index
    %c0_31 = arith.constant 0 : index
    %37 = vector.load %arg8[%c36_30, %c0_31] : memref<72x128xf32, #tpu.memory_space<vmem>>, vector<18x128xf32>
    tpu.vector_store %arg8[%c36_30, %c0_31], %36 {strides = array<i32>} : memref<72x128xf32, #tpu.memory_space<vmem>>, vector<18x128xf32>,
    %38 = vector.extract_strided_slice %27 {offsets = [54, 0], sizes = [16, 128], strides = [1, 1]} : vector<70x128xf32> to vector<16x128xf32>
    %39 = tpu.concatenate %28, %38, %28 in 0 : vector<1x128xf32>, vector<16x128xf32>, vector<1x128xf32> -> vector<18x128xf32>
    %c54_32 = arith.constant 54 : index
    %c0_33 = arith.constant 0 : index
    %40 = vector.load %arg8[%c54_32, %c0_33] : memref<72x128xf32, #tpu.memory_space<vmem>>, vector<18x128xf32>
    tpu.vector_store %arg8[%c54_32, %c0_33], %39 {strides = array<i32>} : memref<72x128xf32, #tpu.memory_space<vmem>>, vector<18x128xf32>,
    %c0_34 = arith.constant 0 : index
    %c0_35 = arith.constant 0 : index
    %41 = vector.load %arg8[%c0_34, %c0_35] : memref<72x128xf32, #tpu.memory_space<vmem>>, vector<70x128xf32>
    %c1_36 = arith.constant 1 : index
    %c0_37 = arith.constant 0 : index
    %42 = vector.load %arg8[%c1_36, %c0_37] : memref<72x128xf32, #tpu.memory_space<vmem>>, vector<70x128xf32>
    %c2_38 = arith.constant 2 : index
    %c0_39 = arith.constant 0 : index
    %43 = vector.load %arg8[%c2_38, %c0_39] : memref<72x128xf32, #tpu.memory_space<vmem>>, vector<70x128xf32>
    %44 = tpu.concatenate %41, %42, %43 in 1 : vector<70x128xf32>, vector<70x128xf32>, vector<70x128xf32> -> vector<70x384xf32>
    %c0_40 = arith.constant 0 : index
    %c0_41 = arith.constant 0 : index
    %45 = vector.load %arg4[%c0_40, %c0_41] : memref<384x128xf32, #tpu.memory_space<vmem>>, vector<384x128xf32>
    %cst_42 = arith.constant dense<0.000000e+00> : vector<70x128xf32>
    %46 = tpu.matmul %44, %45, %cst_42 {dimension_numbers = #tpu.dot_dimension_numbers<[1], [0], [0], [1], [0, 0, 1, 1], [], []>} : vector<70x384xf32>, vector<384x128xf32>, vector<70x128xf32> -> vector<70x128xf32>
    %c0_43 = arith.constant 0 : index
    %c0_44 = arith.constant 0 : index
    %47 = vector.load %arg5[%c0_43, %c0_44] : memref<1x128xf32, #tpu.memory_space<vmem>>, vector<1x128xf32>
    %48 = vector.broadcast %47 : vector<1x128xf32> to vector<70x128xf32>
    %49 = arith.addf %46, %48 : vector<70x128xf32>
    %cst_45 = arith.constant 0.000000e+00 : f32
    %50 = vector.broadcast %cst_45 : f32 to vector<70x128xf32>
    %51 = arith.maximumf %49, %50 : vector<70x128xf32>
    %52 = vector.extract_strided_slice %51 {offsets = [0, 0], sizes = [16, 128], strides = [1, 1]} : vector<70x128xf32> to vector<16x128xf32>
    %c0_46 = arith.constant 0 : index
    %c0_47 = arith.constant 0 : index
    %c0_48 = arith.constant 0 : index
    %53 = vector.load %arg6[%c0_46, %c0_47, %c0_48] : memref<4x16x128xf32, #tpu.memory_space<vmem>>, vector<1x16x128xf32>
    %54 = vector.shape_cast %53 : vector<1x16x128xf32> to vector<16x128xf32>
    %55 = vector.shape_cast %52 : vector<16x128xf32> to vector<1x16x128xf32>
    tpu.vector_store %arg6[%c0_46, %c0_47, %c0_48], %55 {strides = array<i32>} : memref<4x16x128xf32, #tpu.memory_space<vmem>>, vector<1x16x128xf32>,
    %56 = vector.extract_strided_slice %51 {offsets = [18, 0], sizes = [16, 128], strides = [1, 1]} : vector<70x128xf32> to vector<16x128xf32>
    %c1_49 = arith.constant 1 : index
    %c0_50 = arith.constant 0 : index
    %c0_51 = arith.constant 0 : index
    %57 = vector.load %arg6[%c1_49, %c0_50, %c0_51] : memref<4x16x128xf32, #tpu.memory_space<vmem>>, vector<1x16x128xf32>
    %58 = vector.shape_cast %57 : vector<1x16x128xf32> to vector<16x128xf32>
    %59 = vector.shape_cast %56 : vector<16x128xf32> to vector<1x16x128xf32>
    tpu.vector_store %arg6[%c1_49, %c0_50, %c0_51], %59 {strides = array<i32>} : memref<4x16x128xf32, #tpu.memory_space<vmem>>, vector<1x16x128xf32>,
    %60 = vector.extract_strided_slice %51 {offsets = [36, 0], sizes = [16, 128], strides = [1, 1]} : vector<70x128xf32> to vector<16x128xf32>
    %c2_52 = arith.constant 2 : index
    %c0_53 = arith.constant 0 : index
    %c0_54 = arith.constant 0 : index
    %61 = vector.load %arg6[%c2_52, %c0_53, %c0_54] : memref<4x16x128xf32, #tpu.memory_space<vmem>>, vector<1x16x128xf32>
    %62 = vector.shape_cast %61 : vector<1x16x128xf32> to vector<16x128xf32>
    %63 = vector.shape_cast %60 : vector<16x128xf32> to vector<1x16x128xf32>
    tpu.vector_store %arg6[%c2_52, %c0_53, %c0_54], %63 {strides = array<i32>} : memref<4x16x128xf32, #tpu.memory_space<vmem>>, vector<1x16x128xf32>,
    %64 = vector.extract_strided_slice %51 {offsets = [54, 0], sizes = [16, 128], strides = [1, 1]} : vector<70x128xf32> to vector<16x128xf32>
    %c3_55 = arith.constant 3 : index
    %c0_56 = arith.constant 0 : index
    %c0_57 = arith.constant 0 : index
    %65 = vector.load %arg6[%c3_55, %c0_56, %c0_57] : memref<4x16x128xf32, #tpu.memory_space<vmem>>, vector<1x16x128xf32>
    %66 = vector.shape_cast %65 : vector<1x16x128xf32> to vector<16x128xf32>
    %67 = vector.shape_cast %64 : vector<16x128xf32> to vector<1x16x128xf32>
    tpu.vector_store %arg6[%c3_55, %c0_56, %c0_57], %67 {strides = array<i32>} : memref<4x16x128xf32, #tpu.memory_space<vmem>>, vector<1x16x128xf32>,
    return
  }
  func.func @transform_0(%arg0: i32) -> (i32, i32, i32) {
    %c0_i32 = arith.constant 0 : i32
    %c0_i32_0 = arith.constant 0 : i32
    %c0_i32_1 = arith.constant 0 : i32
    return %arg0, %c0_i32, %c0_i32_0 : i32, i32, i32
  }
  func.func @transform_1(%arg0: i32) -> (i32, i32) {
    %c0_i32 = arith.constant 0 : i32
    %c0_i32_0 = arith.constant 0 : i32
    %c0_i32_1 = arith.constant 0 : i32
    return %c0_i32, %c0_i32_0 : i32, i32
  }
  func.func @transform_2(%arg0: i32) -> (i32, i32) {
    %c0_i32 = arith.constant 0 : i32
    %c0_i32_0 = arith.constant 0 : i32
    %c0_i32_1 = arith.constant 0 : i32
    return %c0_i32, %c0_i32_0 : i32, i32
  }
  func.func @transform_3(%arg0: i32) -> (i32, i32) {
    %c0_i32 = arith.constant 0 : i32
    %c0_i32_0 = arith.constant 0 : i32
    %c0_i32_1 = arith.constant 0 : i32
    return %c0_i32, %c0_i32_0 : i32, i32
  }
  func.func @transform_4(%arg0: i32) -> (i32, i32) {
    %c0_i32 = arith.constant 0 : i32
    %c0_i32_0 = arith.constant 0 : i32
    %c0_i32_1 = arith.constant 0 : i32
    return %c0_i32, %c0_i32_0 : i32, i32
  }
  func.func @transform_5(%arg0: i32) -> (i32, i32, i32) {
    %c0_i32 = arith.constant 0 : i32
    %c0_i32_0 = arith.constant 0 : i32
    %c0_i32_1 = arith.constant 0 : i32
    return %arg0, %c0_i32, %c0_i32_0 : i32, i32, i32
  }
}

</mosaic_0001>

<llo_original>
// kernel: tile.13
$region0: #{tile.13}
  #allocation0 [shape = 's32[1]{0}', space=sflag, size = 0x4, scoped, tag = 'scoped memory for tile.13']
  %s0 = inlined_call_operand.vmem [shape: f32[8], index: 0, kind: input, shape index: {}]
  %s1 = inlined_call_operand.vmem [shape: f32[16,8], index: 1, kind: output, shape index: {}]
  // Predicated region
  $region2: #{tile.13} parent=0 // pred_check
    _
  $region3: #{tile.13} parent=0 // pred_check_branch
    %3 = sbr.rel (0) target = $region5
  $region4: #{tile.13} parent=0 // pred_region
    _
  $region5: #{tile.13} parent=0 // pred_fallthru
    _
  %v4 = vld [vmem:[%s0] ss:$0 sm:$0xff]
  %5 = vst [vmem:[%s1] sm:$0xff] %v4
  %s6 = scalar_lea.vmem %s1, 8
  %7 = vst [vmem:[%s6] sm:$0xff] %v4

// kernel: tile.14
$region0: #{tile.14}
  %s0 = inlined_call_operand.vmem [shape: f32[16,8], index: 0, kind: input, shape index: {}]
  %s1 = inlined_call_operand.vmem [shape: f32[1,128], index: 1, kind: output, shape index: {}]
  $region1: #{tile.14} parent=0
    #allocation0 [shape = 'u8[4096]{0}', space=vmem, size = 0x1000, scoped, tag = 'scoped mem for output reshape']
    %v2 = vld [vmem:[%s0] sm:$0x1]
    %vm3 = vcmask 64512
    %4 = vst.msk [vmem:[#allocation0] sm:$0x1] %vm3, %v2
    %s5 = scalar_lea.vmem %s0, 15
    %v6 = vld [vmem:[%s5] sm:$0x1]
    %7 = vrot.lane.b32.xlu0 %v6, 120
    %v8 = vpop.permute.xlu0 %7
    %vm9 = vcmask 1048512
    %10 = vst.msk [vmem:[#allocation0] sm:$0x1] %vm9, %v8
    %s11 = scalar_lea.vmem %s0, 14
    %v12 = vld [vmem:[%s11] sm:$0x1]
    %13 = vrot.lane.b32.xlu0 %v12, 112
    %v14 = vpop.permute.xlu0 %13
    %vm15 = vcmask 982912
    %16 = vst.msk [vmem:[#allocation0] sm:$0x1] %vm15, %v14
    %s17 = scalar_lea.vmem %s0, 13
    %v18 = vld [vmem:[%s17] sm:$0x1]
    %19 = vrot.lane.b32.xlu0 %v18, 104
    %v20 = vpop.permute.xlu0 %19
    %vm21 = vcmask 917312
    %22 = vst.msk [vmem:[#allocation0] sm:$0x1] %vm21, %v20
    %s23 = scalar_lea.vmem %s0, 12
    %v24 = vld [vmem:[%s23] sm:$0x1]
    %25 = vrot.lane.b32.xlu0 %v24, 96
    %v26 = vpop.permute.xlu0 %25
    %vm27 = vcmask 851712
    %28 = vst.msk [vmem:[#allocation0] sm:$0x1] %vm27, %v26
    %s29 = scalar_lea.vmem %s0, 11
    %v30 = vld [vmem:[%s29] sm:$0x1]
    %31 = vrot.lane.b32.xlu0 %v30, 88
    %v32 = vpop.permute.xlu0 %31
    %vm33 = vcmask 786112
    %34 = vst.msk [vmem:[#allocation0] sm:$0x1] %vm33, %v32
    %s35 = scalar_lea.vmem %s0, 10
    %v36 = vld [vmem:[%s35] sm:$0x1]
    %37 = vrot.lane.b32.xlu0 %v36, 80
    %v38 = vpop.permute.xlu0 %37
    %vm39 = vcmask 720512
    %40 = vst.msk [vmem:[#allocation0] sm:$0x1] %vm39, %v38
    %s41 = scalar_lea.vmem %s0, 9
    %v42 = vld [vmem:[%s41] sm:$0x1]
    %43 = vrot.lane.b32.xlu0 %v42, 72
    %v44 = vpop.permute.xlu0 %43
    %vm45 = vcmask 654912
    %46 = vst.msk [vmem:[#allocation0] sm:$0x1] %vm45, %v44
    %s47 = scalar_lea.vmem %s0, 8
    %v48 = vld [vmem:[%s47] sm:$0x1]
    %49 = vrot.lane.b32.xlu0 %v48, 64
    %v50 = vpop.permute.xlu0 %49
    %vm51 = vcmask 589312
    %52 = vst.msk [vmem:[#allocation0] sm:$0x1] %vm51, %v50
    %s53 = scalar_lea.vmem %s0, 7
    %v54 = vld [vmem:[%s53] sm:$0x1]
    %55 = vrot.lane.b32.xlu0 %v54, 56
    %v56 = vpop.permute.xlu0 %55
    %vm57 = vcmask 523712
    %58 = vst.msk [vmem:[#allocation0] sm:$0x1] %vm57, %v56
    %s59 = scalar_lea.vmem %s0, 6
    %v60 = vld [vmem:[%s59] sm:$0x1]
    %61 = vrot.lane.b32.xlu0 %v60, 48
    %v62 = vpop.permute.xlu0 %61
    %vm63 = vcmask 458112
    %64 = vst.msk [vmem:[#allocation0] sm:$0x1] %vm63, %v62
    %s65 = scalar_lea.vmem %s0, 5
    %v66 = vld [vmem:[%s65] sm:$0x1]
    %67 = vrot.lane.b32.xlu0 %v66, 40
    %v68 = vpop.permute.xlu0 %67
    %vm69 = vcmask 392512
    %70 = vst.msk [vmem:[#allocation0] sm:$0x1] %vm69, %v68
    %s71 = scalar_lea.vmem %s0, 4
    %v72 = vld [vmem:[%s71] sm:$0x1]
    %73 = vrot.lane.b32.xlu0 %v72, 32
    %v74 = vpop.permute.xlu0 %73
    %vm75 = vcmask 326912
    %76 = vst.msk [vmem:[#allocation0] sm:$0x1] %vm75, %v74
    %s77 = scalar_lea.vmem %s0, 3
    %v78 = vld [vmem:[%s77] sm:$0x1]
    %79 = vrot.lane.b32.xlu0 %v78, 24
    %v80 = vpop.permute.xlu0 %79
    %vm81 = vcmask 261312
    %82 = vst.msk [vmem:[#allocation0] sm:$0x1] %vm81, %v80
    %s83 = scalar_lea.vmem %s0, 2
    %v84 = vld [vmem:[%s83] sm:$0x1]
    %85 = vrot.lane.b32.xlu0 %v84, 16
    %v86 = vpop.permute.xlu0 %85
    %vm87 = vcmask 195712
    %88 = vst.msk [vmem:[#allocation0] sm:$0x1] %vm87, %v86
    %s89 = scalar_lea.vmem %s0, 1
    %v90 = vld [vmem:[%s89] sm:$0x1]
    %91 = vrot.lane.b32.xlu0 %v90, 8
    %v92 = vpop.permute.xlu0 %91
    %vm93 = vcmask 130112
    %94 = vst.msk [vmem:[#allocation0] sm:$0x1] %vm93, %v92
    %s96 = sshllo.u32 0, 1
    %v98 = vld [vmem:[#allocation0] sm:%s96]
    %s99 = sshllo.u32 0, 1
    %100 = vst [vmem:[%s1] sm:%s99] %v98

// kernel: contracting_stack_forward.1
$region0: #{contracting_stack_forward.1}
  #allocation0 [shape = 'u32[]', space=smem, size = 0x4, offset = 0x4, fixed_abs, tag = 'smem constant byte address 0x4 - core index']
  #allocation1 [shape = 'u32[144,128]{1,0:T(1,128)}', space=vmem, size = 0x12000, scoped, tag = 'internal scratch']
  #allocation2 [shape = 'f32[72,64]{1,0:T(8,128)}', space=vmem, size = 0x9000, scoped, tag = 'scratch operand']
  #allocation3 [shape = 'f32[72,128]{1,0:T(8,128)}', space=vmem, size = 0x9000, scoped, tag = 'scratch operand']
  %s0 = inlined_call_operand.vmem [shape: f32[8,16,64], index: 0, kind: input, shape index: {}]
  %s1 = inlined_call_operand.vmem [shape: f32[192,128], index: 1, kind: input, shape index: {}]
  %s2 = inlined_call_operand.vmem [shape: f32[1,128], index: 2, kind: input, shape index: {}]
  %s3 = inlined_call_operand.vmem [shape: f32[384,128], index: 3, kind: input, shape index: {}]
  %s4 = inlined_call_operand.vmem [shape: f32[1,128], index: 4, kind: input, shape index: {}]
  %s5 = inlined_call_operand.vmem [shape: f32[8,16,128], index: 5, kind: output, shape index: {}]
  %s6 = sld [smem:[#allocation0]]
  $region53: #{contracting_stack_forward.1} parent=0
    _
  %s8 = ssub.s32 1, %s6
  %s9 = scalar_select 0, %s8, %s6
  loop: start=0, step=1, limit=4
  $region2: #{contracting_stack_forward.1} parent=0 // loop_pre_header
    _
  $region3: #{contracting_stack_forward.1} parent=0 // loop_header
    %s11 = sphi 0, %s15
    %p12 = scmp.ge.s32.totalorder %s11, 4
    %s21 = sphi 0, %s23
    %s24 = sphi 0, %s21
    %s25 = sphi 0, %s24
    %s41 = sphi 0, %s25
    %s45 = sphi 0, %s45
    %s47 = sphi 0, %s45
    %s48 = sphi 0, %s47
    %s62 = sphi 0, %s48
    %s66 = sphi 0, %s66
    %s68 = sphi 0, %s66
    %s69 = sphi 0, %s68
    %s83 = sphi 0, %s69
    %s87 = sphi 0, %s87
    %s89 = sphi 0, %s87
    %s90 = sphi 0, %s89
    %s104 = sphi 0, %s90
    %s108 = sphi 0, %s108
    %s110 = sphi 0, %s108
    %s111 = sphi 0, %s110
    %s125 = sphi 0, %s111
    %s131 = sphi 0, %s133
    %s134 = sphi 0, %s131
    %s135 = sphi 0, %s134
    %s151 = sphi 0, %s135
  $region4: #{contracting_stack_forward.1} parent=0 // loop_header_branch
    %14 = sbr.rel (%p12) target = $region8
  $region5: #{contracting_stack_forward.1} parent=0 // loop_body
    %s16 = ssub.s32 %s11, 1
    %s17 = ssub.s32 %s11, 2
    %s18 = sadd.s32 %s11, 1
    %s19 = ssub.s32 %s11, %s18
    %p20 = scmp.eq.s32.totalorder %s19, 0
    %s22 = sadd.s32 %s21, 1
    %s23 = scalar_select %p20, %s21, %s22
    %p26 = pneg %p20
    %p27 = scmp.eq.s32.totalorder %s11, 1
    %p28 = por %p26, %p27
    %p29 = scmp.ne.s32.totalorder %s21, %s24
    %p30 = scmp.eq.s32.totalorder %s11, 0
    %p31 = por %p29, %p30
    %p32 = scmp.ne.s32.totalorder %s21, %s24
    %p33 = scmp.eq.s32.totalorder %s16, 1
    %p34 = por %p32, %p33
    %p35 = scmp.ne.s32.totalorder %s24, %s25
    %p36 = scmp.eq.s32.totalorder %s16, 0
    %p37 = por %p35, %p36
    %p38 = scmp.ne.s32.totalorder %s24, %s25
    %p39 = scmp.eq.s32.totalorder %s17, 1
    %p40 = por %p38, %p39
    %p42 = scmp.ne.s32.totalorder %s25, %s41
    %p43 = scmp.eq.s32.totalorder %s17, 0
    %p44 = por %p42, %p43
    %s46 = sadd.s32 %s45, 1
    %p49 = scmp.eq.s32.totalorder %s11, 1
    %p50 = scmp.ne.s32.totalorder %s45, %s47
    %p51 = scmp.eq.s32.totalorder %s11, 0
    %p52 = por %p50, %p51
    %p53 = scmp.ne.s32.totalorder %s45, %s47
    %p54 = scmp.eq.s32.totalorder %s16, 1
    %p55 = por %p53, %p54
    %p56 = scmp.ne.s32.totalorder %s47, %s48
    %p57 = scmp.eq.s32.totalorder %s16, 0
    %p58 = por %p56, %p57
    %p59 = scmp.ne.s32.totalorder %s47, %s48
    %p60 = scmp.eq.s32.totalorder %s17, 1
    %p61 = por %p59, %p60
    %p63 = scmp.ne.s32.totalorder %s48, %s62
    %p64 = scmp.eq.s32.totalorder %s17, 0
    %p65 = por %p63, %p64
    %s67 = sadd.s32 %s66, 1
    %p70 = scmp.eq.s32.totalorder %s11, 1
    %p71 = scmp.ne.s32.totalorder %s66, %s68
    %p72 = scmp.eq.s32.totalorder %s11, 0
    %p73 = por %p71, %p72
    %p74 = scmp.ne.s32.totalorder %s66, %s68
    %p75 = scmp.eq.s32.totalorder %s16, 1
    %p76 = por %p74, %p75
    %p77 = scmp.ne.s32.totalorder %s68, %s69
    %p78 = scmp.eq.s32.totalorder %s16, 0
    %p79 = por %p77, %p78
    %p80 = scmp.ne.s32.totalorder %s68, %s69
    %p81 = scmp.eq.s32.totalorder %s17, 1
    %p82 = por %p80, %p81
    %p84 = scmp.ne.s32.totalorder %s69, %s83
    %p85 = scmp.eq.s32.totalorder %s17, 0
    %p86 = por %p84, %p85
    %s88 = sadd.s32 %s87, 1
    %p91 = scmp.eq.s32.totalorder %s11, 1
    %p92 = scmp.ne.s32.totalorder %s87, %s89
    %p93 = scmp.eq.s32.totalorder %s11, 0
    %p94 = por %p92, %p93
    %p95 = scmp.ne.s32.totalorder %s87, %s89
    %p96 = scmp.eq.s32.totalorder %s16, 1
    %p97 = por %p95, %p96
    %p98 = scmp.ne.s32.totalorder %s89, %s90
    %p99 = scmp.eq.s32.totalorder %s16, 0
    %p100 = por %p98, %p99
    %p101 = scmp.ne.s32.totalorder %s89, %s90
    %p102 = scmp.eq.s32.totalorder %s17, 1
    %p103 = por %p101, %p102
    %p105 = scmp.ne.s32.totalorder %s90, %s104
    %p106 = scmp.eq.s32.totalorder %s17, 0
    %p107 = por %p105, %p106
    %s109 = sadd.s32 %s108, 1
    %p112 = scmp.eq.s32.totalorder %s11, 1
    %p113 = scmp.ne.s32.totalorder %s108, %s110
    %p114 = scmp.eq.s32.totalorder %s11, 0
    %p115 = por %p113, %p114
    %p116 = scmp.ne.s32.totalorder %s108, %s110
    %p117 = scmp.eq.s32.totalorder %s16, 1
    %p118 = por %p116, %p117
    %p119 = scmp.ne.s32.totalorder %s110, %s111
    %p120 = scmp.eq.s32.totalorder %s16, 0
    %p121 = por %p119, %p120
    %p122 = scmp.ne.s32.totalorder %s110, %s111
    %p123 = scmp.eq.s32.totalorder %s17, 1
    %p124 = por %p122, %p123
    %p126 = scmp.ne.s32.totalorder %s111, %s125
    %p127 = scmp.eq.s32.totalorder %s17, 0
    %p128 = por %p126, %p127
    %s129 = ssub.s32 %s11, %s18
    %p130 = scmp.eq.s32.totalorder %s129, 0
    %s132 = sadd.s32 %s131, 1
    %s133 = scalar_select %p130, %s131, %s132
    %p136 = pneg %p130
    %p137 = scmp.eq.s32.totalorder %s11, 1
    %p138 = por %p136, %p137
    %p139 = scmp.ne.s32.totalorder %s131, %s134
    %p140 = scmp.eq.s32.totalorder %s11, 0
    %p141 = por %p139, %p140
    %p142 = scmp.ne.s32.totalorder %s131, %s134
    %p143 = scmp.eq.s32.totalorder %s16, 1
    %p144 = por %p142, %p143
    %p145 = scmp.ne.s32.totalorder %s134, %s135
    %p146 = scmp.eq.s32.totalorder %s16, 0
    %p147 = por %p145, %p146
    %p148 = scmp.ne.s32.totalorder %s134, %s135
    %p149 = scmp.eq.s32.totalorder %s17, 1
    %p150 = por %p148, %p149
    %p152 = scmp.ne.s32.totalorder %s135, %s151
    %p153 = scmp.eq.s32.totalorder %s17, 0
    %p154 = por %p152, %p153
    %p155 = scmp.le.s32.totalorder 1, %s11
    %p156 = scmp.lt.s32.totalorder %s11, 3
    %p157 = pnand %p155, %p156
    %p158 = pneg %p157
    // Predicated region
    $region9: #{contracting_stack_forward.1} parent=5 // pred_check
      _
    $region10: #{contracting_stack_forward.1} parent=5 // pred_check_branch
      %160 = sbr.rel (%p157) target = $region12
    $region11: #{contracting_stack_forward.1} parent=5 // pred_region
      %s161 = ssub.s32 %s11, 1
      // Predicated region
      $region13: #{contracting_stack_forward.1} parent=11 // pred_check
        %p162 = pneg %p58
      $region14: #{contracting_stack_forward.1} parent=11 // pred_check_branch
        %164 = sbr.rel (%p162) target = $region16
      $region15: #{contracting_stack_forward.1} parent=11 // pred_region
        _
      $region16: #{contracting_stack_forward.1} parent=11 // pred_fallthru
        _
      // Predicated region
      $region17: #{contracting_stack_forward.1} parent=11 // pred_check
        %p165 = pneg %p79
      $region18: #{contracting_stack_forward.1} parent=11 // pred_check_branch
        %167 = sbr.rel (%p165) target = $region20
      $region19: #{contracting_stack_forward.1} parent=11 // pred_region
        _
      $region20: #{contracting_stack_forward.1} parent=11 // pred_fallthru
        _
      // Predicated region
      $region21: #{contracting_stack_forward.1} parent=11 // pred_check
        %p168 = pneg %p100
      $region22: #{contracting_stack_forward.1} parent=11 // pred_check_branch
        %170 = sbr.rel (%p168) target = $region24
      $region23: #{contracting_stack_forward.1} parent=11 // pred_region
        _
      $region24: #{contracting_stack_forward.1} parent=11 // pred_fallthru
        _
      // Predicated region
      $region25: #{contracting_stack_forward.1} parent=11 // pred_check
        %p171 = pneg %p121
      $region26: #{contracting_stack_forward.1} parent=11 // pred_check_branch
        %173 = sbr.rel (%p171) target = $region28
      $region27: #{contracting_stack_forward.1} parent=11 // pred_region
        _
      $region28: #{contracting_stack_forward.1} parent=11 // pred_fallthru
        _
    $region12: #{contracting_stack_forward.1} parent=5 // pred_fallthru
      _
    %p174 = scmp.lt.s32.totalorder %s11, 2
    // Predicated region
    $region29: #{contracting_stack_forward.1} parent=5 // pred_check
      %p175 = pneg %p174
    $region30: #{contracting_stack_forward.1} parent=5 // pred_check_branch
      %177 = sbr.rel (%p175) target = $region32
    $region31: #{contracting_stack_forward.1} parent=5 // pred_region
      // Predicated region
      $region33: #{contracting_stack_forward.1} parent=31 // pred_check
        %p178 = pneg %p31
      $region34: #{contracting_stack_forward.1} parent=31 // pred_check_branch
        %180 = sbr.rel (%p178) target = $region36
      $region35: #{contracting_stack_forward.1} parent=31 // pred_region
        %s181 = smul.u32 4, %s11
        %p182 = scmp.lt.s32.totalorder %s181, 7
        %s183 = scalar_select %p182, %s181, 7
        %s184 = smul.addr %s183, 2
        %s185 = smul.addr %s184, 8
        %s186 = scalar_lea.vmem %s0, %s185
        %s187 = smul.u32 4, %s11
      $region36: #{contracting_stack_forward.1} parent=31 // pred_fallthru
        _
    $region32: #{contracting_stack_forward.1} parent=5 // pred_fallthru
      _
    %p188 = scmp.le.s32.totalorder 1, %s11
    %p189 = scmp.lt.s32.totalorder %s11, 3
    %p190 = pnand %p188, %p189
    %p191 = pneg %p190
    // Predicated region
    $region37: #{contracting_stack_forward.1} parent=5 // pred_check
      _
    $region38: #{contracting_stack_forward.1} parent=5 // pred_check_branch
      %193 = sbr.rel (%p190) target = $region40
    $region39: #{contracting_stack_forward.1} parent=5 // pred_region
      %s194 = ssub.s32 %s11, 1
      %s195 = smul.u32 4, %s16
      %p196 = scmp.lt.s32.totalorder %s195, 7
      %s197 = scalar_select %p196, %s195, 7
      %s198 = smul.addr %s197, 2
      %s199 = smul.addr %s198, 8
      %s200 = scalar_lea.vmem %s0, %s199
      %p201 = pneg %p37
      %p202 = pneg %p34
      %p203 = pneg %p58
      %p204 = pneg %p55
      %p205 = pneg %p79
      %p206 = pneg %p76
      %p207 = pneg %p100
      %p208 = pneg %p97
      %p209 = pneg %p121
      %p210 = pneg %p118
      %p211 = pneg %p147
      %p212 = pneg %p144
      %s213 = smul.u32 4, %s16
      %p214 = scmp.lt.s32.totalorder %s213, 7
      %s215 = scalar_select %p214, %s213, 7
      %s216 = smul.addr %s215, 2
      %s217 = smul.addr %s216, 8
      %s218 = scalar_lea.vmem %s5, %s217
      %s219 = smul.u32 4, %s16
      %p220 = scmp.lt.s32.totalorder %s219, 7
      %s221 = scalar_select %p220, %s219, 7
      %s222 = smul.addr %s221, 2
      %s223 = smul.addr %s222, 8
      %s224 = scalar_lea.vmem %s0, %s223
      %s225 = smul.u32 4, %s16
      %s226 = smul.u32 4, %s16
      %p227 = scmp.lt.s32.totalorder %s226, 7
      %s228 = scalar_select %p227, %s226, 7
      %s229 = smul.addr %s228, 2
      %s230 = smul.addr %s229, 8
      %s231 = scalar_lea.vmem %s5, %s230
      %s232 = smul.u32 4, %s16
      %v233 = vld [vmem:[%s224] sm:$0xff]
      %v234 = vld [vmem:[%s224 + $0x8] sm:$0xff]
      %vm237 = vcmask 1040384
      %v238 = vrot.slane %v233, 7
      %v239 = vrot.slane %v234, 7
      %v240 = vsel %vm237, %v238, %v239
      %v244 = vsel %vm237, 0.0, %v238
      %v245 = vsel %vm237, %v239, 0.0
      %vm246 = vcmask 523264
      %247 = vst.msk [vmem:[#allocation2] sm:$0xff] %vm246, %v244
      %248 = vst.msk [vmem:[#allocation2 + $0x8] sm:$0xff] %vm246, %v240
      %vm249 = vcmask 517120
      %250 = vst.msk [vmem:[#allocation2 + $0x10] sm:$0x3] %vm249, %v245
      %s251 = scalar_lea.vmem %s224, 16
      %v252 = vld [vmem:[%s251] sm:$0xff]
      %v253 = vld [vmem:[%s251 + $0x8] sm:$0xff]
      %v256 = vrot.slane %v252, 7
      %v257 = vrot.slane %v253, 7
      %v258 = vsel %vm237, %v256, %v257
      %v262 = vsel %vm237, 0.0, %v256
      %v263 = vsel %vm237, %v257, 0.0
      %264 = vst.msk [vmem:[#allocation2 + $0x12] sm:$0xff] %vm246, %v262
      %265 = vst.msk [vmem:[#allocation2 + $0x1a] sm:$0xff] %vm246, %v258
      %266 = vst.msk [vmem:[#allocation2 + $0x22] sm:$0x3] %vm249, %v263
      %s267 = scalar_lea.vmem %s224, 32
      %v268 = vld [vmem:[%s267] sm:$0xff]
      %v269 = vld [vmem:[%s267 + $0x8] sm:$0xff]
      %v272 = vrot.slane %v268, 7
      %v273 = vrot.slane %v269, 7
      %v274 = vsel %vm237, %v272, %v273
      %v278 = vsel %vm237, 0.0, %v272
      %v279 = vsel %vm237, %v273, 0.0
      %280 = vst.msk [vmem:[#allocation2 + $0x24] sm:$0xff] %vm246, %v278
      %281 = vst.msk [vmem:[#allocation2 + $0x2c] sm:$0xff] %vm246, %v274
      %282 = vst.msk [vmem:[#allocation2 + $0x34] sm:$0x3] %vm249, %v279
      %s283 = scalar_lea.vmem %s224, 48
      %v284 = vld [vmem:[%s283] sm:$0xff]
      %v285 = vld [vmem:[%s283 + $0x8] sm:$0xff]
      %v288 = vrot.slane %v284, 7
      %v289 = vrot.slane %v285, 7
      %v290 = vsel %vm237, %v288, %v289
      %v294 = vsel %vm237, 0.0, %v288
      %v295 = vsel %vm237, %v289, 0.0
      %296 = vst.msk [vmem:[#allocation2 + $0x36] sm:$0xff] %vm246, %v294
      %297 = vst.msk [vmem:[#allocation2 + $0x3e] sm:$0xff] %vm246, %v290
      %298 = vst.msk [vmem:[#allocation2 + $0x46] sm:$0x3] %vm249, %v295
      %v299 = vld [vmem:[#allocation2] sm:$0xff]
      %v300 = vld [vmem:[#allocation2 + $0x8] sm:$0xff]
      %v301 = vld [vmem:[#allocation2 + $0x10] sm:$0xff]
      %v302 = vld [vmem:[#allocation2 + $0x18] sm:$0xff]
      %v303 = vld [vmem:[#allocation2 + $0x20] sm:$0xff]
      %v304 = vld [vmem:[#allocation2 + $0x28] sm:$0xff]
      %v305 = vld [vmem:[#allocation2 + $0x30] sm:$0xff]
      %v306 = vld [vmem:[#allocation2 + $0x38] sm:$0xff]
      %v307 = vld [vmem:[#allocation2 + $0x40] sm:$0x3f]
      %v308 = vld [vmem:[#allocation2 + $0x1] sm:$0xff]
      %v309 = vld [vmem:[#allocation2 + $0x9] sm:$0xff]
      %v310 = vld [vmem:[#allocation2 + $0x11] sm:$0xff]
      %v311 = vld [vmem:[#allocation2 + $0x19] sm:$0xff]
      %v312 = vld [vmem:[#allocation2 + $0x21] sm:$0xff]
      %v313 = vld [vmem:[#allocation2 + $0x29] sm:$0xff]
      %v314 = vld [vmem:[#allocation2 + $0x31] sm:$0xff]
      %v315 = vld [vmem:[#allocation2 + $0x39] sm:$0xff]
      %v316 = vld [vmem:[#allocation2 + $0x41] sm:$0x3f]
      %v317 = vld [vmem:[#allocation2 + $0x2] sm:$0xff]
      %v318 = vld [vmem:[#allocation2 + $0xa] sm:$0xff]
      %v319 = vld [vmem:[#allocation2 + $0x12] sm:$0xff]
      %v320 = vld [vmem:[#allocation2 + $0x1a] sm:$0xff]
      %v321 = vld [vmem:[#allocation2 + $0x22] sm:$0xff]
      %v322 = vld [vmem:[#allocation2 + $0x2a] sm:$0xff]
      %v323 = vld [vmem:[#allocation2 + $0x32] sm:$0xff]
      %v324 = vld [vmem:[#allocation2 + $0x3a] sm:$0xff]
      %v325 = vld [vmem:[#allocation2 + $0x42] sm:$0x3f]
      %335 = vrot.lane.b32.xlu0 %v308, 64
      %v336 = vpop.permute.xlu0 %335
      %337 = vrot.lane.b32.xlu0 %v309, 64
      %v338 = vpop.permute.xlu0 %337
      %339 = vrot.lane.b32.xlu0 %v310, 64
      %v340 = vpop.permute.xlu0 %339
      %341 = vrot.lane.b32.xlu0 %v311, 64
      %v342 = vpop.permute.xlu0 %341
      %343 = vrot.lane.b32.xlu0 %v312, 64
      %v344 = vpop.permute.xlu0 %343
      %345 = vrot.lane.b32.xlu0 %v313, 64
      %v346 = vpop.permute.xlu0 %345
      %347 = vrot.lane.b32.xlu0 %v314, 64
      %v348 = vpop.permute.xlu0 %347
      %349 = vrot.lane.b32.xlu0 %v315, 64
      %v350 = vpop.permute.xlu0 %349
      %351 = vrot.lane.b32.xlu0 %v316, 64
      %v352 = vpop.permute.xlu0 %351
      %v362 = vsel %vm246, %v299, %v336
      %v363 = vsel %vm246, %v300, %v338
      %v364 = vsel %vm246, %v301, %v340
      %v365 = vsel %vm246, %v302, %v342
      %v366 = vsel %vm246, %v303, %v344
      %v367 = vsel %vm246, %v304, %v346
      %v368 = vsel %vm246, %v305, %v348
      %v369 = vsel %vm246, %v306, %v350
      %v370 = vsel %vm246, %v307, %v352
      %v371 = vld [vmem:[%s1] sm:$0xff]
      %v372 = vld [vmem:[%s1 + $0x8] sm:$0xff]
      %v373 = vld [vmem:[%s1 + $0x10] sm:$0xff]
      %v374 = vld [vmem:[%s1 + $0x18] sm:$0xff]
      %v375 = vld [vmem:[%s1 + $0x20] sm:$0xff]
      %v376 = vld [vmem:[%s1 + $0x28] sm:$0xff]
      %v377 = vld [vmem:[%s1 + $0x30] sm:$0xff]
      %v378 = vld [vmem:[%s1 + $0x38] sm:$0xff]
      %v379 = vld [vmem:[%s1 + $0x40] sm:$0xff]
      %v380 = vld [vmem:[%s1 + $0x48] sm:$0xff]
      %v381 = vld [vmem:[%s1 + $0x50] sm:$0xff]
      %v382 = vld [vmem:[%s1 + $0x58] sm:$0xff]
      %v383 = vld [vmem:[%s1 + $0x60] sm:$0xff]
      %v384 = vld [vmem:[%s1 + $0x68] sm:$0xff]
      %v385 = vld [vmem:[%s1 + $0x70] sm:$0xff]
      %v386 = vld [vmem:[%s1 + $0x78] sm:$0xff]
      %v387 = vld [vmem:[%s1 + $0x80] sm:$0xff]
      %v388 = vld [vmem:[%s1 + $0x88] sm:$0xff]
      %v389 = vld [vmem:[%s1 + $0x90] sm:$0xff]
      %v390 = vld [vmem:[%s1 + $0x98] sm:$0xff]
      %v391 = vld [vmem:[%s1 + $0xa0] sm:$0xff]
      %v392 = vld [vmem:[%s1 + $0xa8] sm:$0xff]
      %v393 = vld [vmem:[%s1 + $0xb0] sm:$0xff]
      %v394 = vld [vmem:[%s1 + $0xb8] sm:$0xff]
      %v395 = vld [vmem:[%s2] sm:$0x1]
      %v397 = vlaneseq
      %v398 = vshrl.u32 %v397, 7
      %v399 = vsub.s32 0, %v398
      %v400 = vrot.slane %v395, %v399
      %v403 = vsel %vm246, %v317, 0
      %v406 = vsel %vm246, %v318, 0
      %v409 = vsel %vm246, %v319, 0
      %v412 = vsel %vm246, %v320, 0
      %v415 = vsel %vm246, %v321, 0
      %v418 = vsel %vm246, %v322, 0
      %v421 = vsel %vm246, %v323, 0
      %v424 = vsel %vm246, %v324, 0
      %v427 = vsel %vm246, %v325, 0
      %429 = vmatprep.subr.mxu0 0.0
      %430 = vmatpush1.msra.mxu0 %v371
      %431 = vmatprep.subr.mxu0 0.0
      %432 = vmatpush1.msra.mxu0 %v372
      %433 = vmatprep.subr.mxu0 0.0
      %434 = vmatpush1.msra.mxu0 %v373
      %435 = vmatprep.subr.mxu0 0.0
      %436 = vmatpush1.msra.mxu0 %v374
      %437 = vmatprep.subr.mxu0 0.0
      %438 = vmatpush1.msra.mxu0 %v375
      %439 = vmatprep.subr.mxu0 0.0
      %440 = vmatpush1.msra.mxu0 %v376
      %441 = vmatprep.subr.mxu0 0.0
      %442 = vmatpush1.msra.mxu0 %v377
      %443 = vmatprep.subr.mxu0 0.0
      %444 = vmatpush1.msra.mxu0 %v378
      %445 = vmatprep.subr.mxu0 0.0
      %446 = vmatpush1.msra.mxu0 %v379
      %447 = vmatprep.subr.mxu0 0.0
      %448 = vmatpush1.msra.mxu0 %v380
      %449 = vmatprep.subr.mxu0 0.0
      %450 = vmatpush1.msra.mxu0 %v381
      %451 = vmatprep.subr.mxu0 0.0
      %452 = vmatpush1.msra.mxu0 %v382
      %453 = vmatprep.subr.mxu0 0.0
      %454 = vmatpush1.msra.mxu0 %v383
      %455 = vmatprep.subr.mxu0 0.0
      %456 = vmatpush1.msra.mxu0 %v384
      %457 = vmatprep.subr.mxu0 0.0
      %458 = vmatpush1.msra.mxu0 %v385
      %459 = vmatprep.subr.mxu0 0.0
      %460 = vmatpush1.msra.mxu0 %v386
      %461 = vmatprep.subr.mxu0 0.0
      %462 = vmatpush1.msra.mxu0 %v387
      %463 = vmatprep.subr.mxu0 0.0
      %464 = vmatpush1.msra.mxu0 %v388
      %465 = vmatprep.subr.mxu0 0.0
      %466 = vmatpush1.msra.mxu0 %v389
      %467 = vmatprep.subr.mxu0 0.0
      %468 = vmatpush1.msra.mxu0 %v390
      %469 = vmatprep.subr.mxu0 0.0
      %470 = vmatpush1.msra.mxu0 %v391
      %471 = vmatprep.subr.mxu0 0.0
      %472 = vmatpush1.msra.mxu0 %v392
      %473 = vmatprep.subr.mxu0 0.0
      %474 = vmatpush1.msra.mxu0 %v393
      %475 = vmatprep.subr.mxu0 0.0
      %476 = vmatpush1.msra.mxu0 %v394
      %477 = vmatprep.subr.mxu0 0.0
      %478 = vmatpush1.msra.mxu0 0.0
      %479 = vmatprep.subr.mxu0 0.0
      %480 = vmatpush1.msra.mxu0 0.0
      %481 = vmatprep.subr.mxu0 0.0
      %482 = vmatpush1.msra.mxu0 0.0
      %483 = vmatprep.subr.mxu0 0.0
      %484 = vmatpush1.msra.mxu0 0.0
      %485 = vmatprep.subr.mxu0 0.0
      %486 = vmatpush1.msra.mxu0 0.0
      %487 = vmatprep.subr.mxu0 0.0
      %488 = vmatpush1.msra.mxu0 0.0
      %489 = vmatprep.subr.mxu0 0.0
      %490 = vmatpush1.msra.mxu0 0.0
      %491 = vmatprep.subr.mxu0 0.0
      %492 = vmatpush1.msra.mxu0 0.0
      %493 = vmatprep.mubr.f32.mxu0 %v403
      %494 = vmatmul.mubr.f32.gmra.mrb[0].mxu0 %v362
      %v495 = vpop.f32.mrb[0].mxu0
      %v496 = vadd.f32 %v400, %v495
      %v497 = vpop.f32.mrb[0].mxu0
      %498 = vmatprep.mubr.f32.mxu0 %v406
      %499 = vmatmul.mubr.f32.gmra.mrb[0].mxu0 %v363
      %v500 = vpop.f32.mrb[0].mxu0
      %v501 = vadd.f32 %v400, %v500
      %v502 = vpop.f32.mrb[0].mxu0
      %503 = vmatprep.mubr.f32.mxu0 %v409
      %504 = vmatmul.mubr.f32.gmra.mrb[0].mxu0 %v364
      %v505 = vpop.f32.mrb[0].mxu0
      %v506 = vadd.f32 %v400, %v505
      %v507 = vpop.f32.mrb[0].mxu0
      %508 = vmatprep.mubr.f32.mxu0 %v412
      %509 = vmatmul.mubr.f32.gmra.mrb[0].mxu0 %v365
      %v510 = vpop.f32.mrb[0].mxu0
      %v511 = vadd.f32 %v400, %v510
      %v512 = vpop.f32.mrb[0].mxu0
      %513 = vmatprep.mubr.f32.mxu0 %v415
      %514 = vmatmul.mubr.f32.gmra.mrb[0].mxu0 %v366
      %v515 = vpop.f32.mrb[0].mxu0
      %v516 = vadd.f32 %v400, %v515
      %v517 = vpop.f32.mrb[0].mxu0
      %518 = vmatprep.mubr.f32.mxu0 %v418
      %519 = vmatmul.mubr.f32.gmra.mrb[0].mxu0 %v367
      %v520 = vpop.f32.mrb[0].mxu0
      %v521 = vadd.f32 %v400, %v520
      %v522 = vpop.f32.mrb[0].mxu0
      %523 = vmatprep.mubr.f32.mxu0 %v421
      %524 = vmatmul.mubr.f32.gmra.mrb[0].mxu0 %v368
      %v525 = vpop.f32.mrb[0].mxu0
      %v526 = vadd.f32 %v400, %v525
      %v527 = vpop.f32.mrb[0].mxu0
      %528 = vmatprep.mubr.f32.mxu0 %v424
      %529 = vmatmul.mubr.f32.gmra.mrb[0].mxu0 %v369
      %v530 = vpop.f32.mrb[0].mxu0
      %v531 = vadd.f32 %v400, %v530
      %v532 = vpop.f32.mrb[0].mxu0
      %533 = vmatprep.mubr.f32.mxu0 %v427
      %534 = vmatmul.mubr.f32.gmra.mrb[0].mxu0 %v370
      %v535 = vpop.f32.mrb[0].mxu0
      %v536 = vadd.f32 %v400, %v535
      %v537 = vpop.f32.mrb[0].mxu0
      %538 = vdwg.mxu0
      %v539 = vmax.f32 %v496, 0.0
      %v540 = vmax.f32 %v501, 0.0
      %v541 = vmax.f32 %v506, 0.0
      %v542 = vmax.f32 %v511, 0.0
      %v543 = vmax.f32 %v516, 0.0
      %v544 = vmax.f32 %v521, 0.0
      %v545 = vmax.f32 %v526, 0.0
      %v546 = vmax.f32 %v531, 0.0
      %v547 = vmax.f32 %v536, 0.0
      %v550 = vrot.slane %v539, 7
      %v551 = vrot.slane %v540, 7
      %v552 = vsel %vm237, %v550, %v551
      %v556 = vsel %vm237, 0.0, %v550
      %v557 = vsel %vm237, %v551, 0.0
      %558 = vst [vmem:[#allocation3] sm:$0xff] %v556
      %559 = vst [vmem:[#allocation3 + $0x8] sm:$0xff] %v552
      %560 = vst [vmem:[#allocation3 + $0x10] sm:$0x3] %v557
      %vm564 = vcmask 1046528
      %v565 = vrot.slane %v541, 1
      %v566 = vrot.slane %v542, 1
      %v567 = vsel %vm564, %v565, %v566
      %v568 = vrot.slane %v543, 1
      %v569 = vsel %vm564, %v566, %v568
      %v573 = vsel %vm237, 0.0, %v567
      %v574 = vsel %vm237, %v568, 0.0
      %575 = vst [vmem:[#allocation3 + $0x12] sm:$0xff] %v573
      %576 = vst [vmem:[#allocation3 + $0x1a] sm:$0xff] %v569
      %577 = vst [vmem:[#allocation3 + $0x22] sm:$0x3] %v574
      %vm580 = vcmask 1044480
      %v581 = vrot.slane %v543, 3
      %v582 = vrot.slane %v544, 3
      %v583 = vsel %vm580, %v581, %v582
      %v584 = vrot.slane %v545, 3
      %v585 = vsel %vm580, %v582, %v584
      %v589 = vsel %vm237, 0.0, %v583
      %v590 = vsel %vm237, %v584, 0.0
      %591 = vst [vmem:[#allocation3 + $0x24] sm:$0xff] %v589
      %592 = vst [vmem:[#allocation3 + $0x2c] sm:$0xff] %v585
      %593 = vst [vmem:[#allocation3 + $0x34] sm:$0x3] %v590
      %vm596 = vcmask 1042432
      %v597 = vrot.slane %v545, 5
      %v598 = vrot.slane %v546, 5
      %v599 = vsel %vm596, %v597, %v598
      %v600 = vrot.slane %v547, 5
      %v601 = vsel %vm596, %v598, %v600
      %v605 = vsel %vm237, 0.0, %v599
      %v606 = vsel %vm237, %v600, 0.0
      %607 = vst [vmem:[#allocation3 + $0x36] sm:$0xff] %v605
      %608 = vst [vmem:[#allocation3 + $0x3e] sm:$0xff] %v601
      %609 = vst [vmem:[#allocation3 + $0x46] sm:$0x3] %v606
      %v610 = vld [vmem:[#allocation3] sm:$0xff]
      %v611 = vld [vmem:[#allocation3 + $0x8] sm:$0xff]
      %v612 = vld [vmem:[#allocation3 + $0x10] sm:$0xff]
      %v613 = vld [vmem:[#allocation3 + $0x18] sm:$0xff]
      %v614 = vld [vmem:[#allocation3 + $0x20] sm:$0xff]
      %v615 = vld [vmem:[#allocation3 + $0x28] sm:$0xff]
      %v616 = vld [vmem:[#allocation3 + $0x30] sm:$0xff]
      %v617 = vld [vmem:[#allocation3 + $0x38] sm:$0xff]
      %v618 = vld [vmem:[#allocation3 + $0x40] sm:$0x3f]
      %v619 = vld [vmem:[#allocation3 + $0x1] sm:$0xff]
      %v620 = vld [vmem:[#allocation3 + $0x9] sm:$0xff]
      %v621 = vld [vmem:[#allocation3 + $0x11] sm:$0xff]
      %v622 = vld [vmem:[#allocation3 + $0x19] sm:$0xff]
      %v623 = vld [vmem:[#allocation3 + $0x21] sm:$0xff]
      %v624 = vld [vmem:[#allocation3 + $0x29] sm:$0xff]
      %v625 = vld [vmem:[#allocation3 + $0x31] sm:$0xff]
      %v626 = vld [vmem:[#allocation3 + $0x39] sm:$0xff]
      %v627 = vld [vmem:[#allocation3 + $0x41] sm:$0x3f]
      %v628 = vld [vmem:[#allocation3 + $0x2] sm:$0xff]
      %v629 = vld [vmem:[#allocation3 + $0xa] sm:$0xff]
      %v630 = vld [vmem:[#allocation3 + $0x12] sm:$0xff]
      %v631 = vld [vmem:[#allocation3 + $0x1a] sm:$0xff]
      %v632 = vld [vmem:[#allocation3 + $0x22] sm:$0xff]
      %v633 = vld [vmem:[#allocation3 + $0x2a] sm:$0xff]
      %v634 = vld [vmem:[#allocation3 + $0x32] sm:$0xff]
      %v635 = vld [vmem:[#allocation3 + $0x3a] sm:$0xff]
      %v636 = vld [vmem:[#allocation3 + $0x42] sm:$0x3f]
      %v637 = vld [vmem:[%s3] sm:$0xff]
      %v638 = vld [vmem:[%s3 + $0x8] sm:$0xff]
      %v639 = vld [vmem:[%s3 + $0x10] sm:$0xff]
      %v640 = vld [vmem:[%s3 + $0x18] sm:$0xff]
      %v641 = vld [vmem:[%s3 + $0x20] sm:$0xff]
      %v642 = vld [vmem:[%s3 + $0x28] sm:$0xff]
      %v643 = vld [vmem:[%s3 + $0x30] sm:$0xff]
      %v644 = vld [vmem:[%s3 + $0x38] sm:$0xff]
      %v645 = vld [vmem:[%s3 + $0x40] sm:$0xff]
      %v646 = vld [vmem:[%s3 + $0x48] sm:$0xff]
      %v647 = vld [vmem:[%s3 + $0x50] sm:$0xff]
      %v648 = vld [vmem:[%s3 + $0x58] sm:$0xff]
      %v649 = vld [vmem:[%s3 + $0x60] sm:$0xff]
      %v650 = vld [vmem:[%s3 + $0x68] sm:$0xff]
      %v651 = vld [vmem:[%s3 + $0x70] sm:$0xff]
      %v652 = vld [vmem:[%s3 + $0x78] sm:$0xff]
      %v653 = vld [vmem:[%s3 + $0x80] sm:$0xff]
      %v654 = vld [vmem:[%s3 + $0x88] sm:$0xff]
      %v655 = vld [vmem:[%s3 + $0x90] sm:$0xff]
      %v656 = vld [vmem:[%s3 + $0x98] sm:$0xff]
      %v657 = vld [vmem:[%s3 + $0xa0] sm:$0xff]
      %v658 = vld [vmem:[%s3 + $0xa8] sm:$0xff]
      %v659 = vld [vmem:[%s3 + $0xb0] sm:$0xff]
      %v660 = vld [vmem:[%s3 + $0xb8] sm:$0xff]
      %v661 = vld [vmem:[%s3 + $0xc0] sm:$0xff]
      %v662 = vld [vmem:[%s3 + $0xc8] sm:$0xff]
      %v663 = vld [vmem:[%s3 + $0xd0] sm:$0xff]
      %v664 = vld [vmem:[%s3 + $0xd8] sm:$0xff]
      %v665 = vld [vmem:[%s3 + $0xe0] sm:$0xff]
      %v666 = vld [vmem:[%s3 + $0xe8] sm:$0xff]
      %v667 = vld [vmem:[%s3 + $0xf0] sm:$0xff]
      %v668 = vld [vmem:[%s3 + $0xf8] sm:$0xff]
      %v669 = vld [vmem:[%s3 + $0x100] sm:$0xff]
      %v670 = vld [vmem:[%s3 + $0x108] sm:$0xff]
      %v671 = vld [vmem:[%s3 + $0x110] sm:$0xff]
      %v672 = vld [vmem:[%s3 + $0x118] sm:$0xff]
      %v673 = vld [vmem:[%s3 + $0x120] sm:$0xff]
      %v674 = vld [vmem:[%s3 + $0x128] sm:$0xff]
      %v675 = vld [vmem:[%s3 + $0x130] sm:$0xff]
      %v676 = vld [vmem:[%s3 + $0x138] sm:$0xff]
      %v677 = vld [vmem:[%s3 + $0x140] sm:$0xff]
      %v678 = vld [vmem:[%s3 + $0x148] sm:$0xff]
      %v679 = vld [vmem:[%s3 + $0x150] sm:$0xff]
      %v680 = vld [vmem:[%s3 + $0x158] sm:$0xff]
      %v681 = vld [vmem:[%s3 + $0x160] sm:$0xff]
      %v682 = vld [vmem:[%s3 + $0x168] sm:$0xff]
      %v683 = vld [vmem:[%s3 + $0x170] sm:$0xff]
      %v684 = vld [vmem:[%s3 + $0x178] sm:$0xff]
      %v685 = vld [vmem:[%s4] sm:$0x1]
      %v687 = vlaneseq
      %v688 = vshrl.u32 %v687, 7
      %v689 = vsub.s32 0, %v688
      %v690 = vrot.slane %v685, %v689
      %692 = vmatprep.subr.mxu0 0.0
      %693 = vmatpush1.msra.mxu0 %v637
      %694 = vmatprep.subr.mxu0 0.0
      %695 = vmatpush1.msra.mxu0 %v638
      %696 = vmatprep.subr.mxu0 0.0
      %697 = vmatpush1.msra.mxu0 %v639
      %698 = vmatprep.subr.mxu0 0.0
      %699 = vmatpush1.msra.mxu0 %v640
      %700 = vmatprep.subr.mxu0 0.0
      %701 = vmatpush1.msra.mxu0 %v641
      %702 = vmatprep.subr.mxu0 0.0
      %703 = vmatpush1.msra.mxu0 %v642
      %704 = vmatprep.subr.mxu0 0.0
      %705 = vmatpush1.msra.mxu0 %v643
      %706 = vmatprep.subr.mxu0 0.0
      %707 = vmatpush1.msra.mxu0 %v644
      %708 = vmatprep.subr.mxu0 0.0
      %709 = vmatpush1.msra.mxu0 %v645
      %710 = vmatprep.subr.mxu0 0.0
      %711 = vmatpush1.msra.mxu0 %v646
      %712 = vmatprep.subr.mxu0 0.0
      %713 = vmatpush1.msra.mxu0 %v647
      %714 = vmatprep.subr.mxu0 0.0
      %715 = vmatpush1.msra.mxu0 %v648
      %716 = vmatprep.subr.mxu0 0.0
      %717 = vmatpush1.msra.mxu0 %v649
      %718 = vmatprep.subr.mxu0 0.0
      %719 = vmatpush1.msra.mxu0 %v650
      %720 = vmatprep.subr.mxu0 0.0
      %721 = vmatpush1.msra.mxu0 %v651
      %722 = vmatprep.subr.mxu0 0.0
      %723 = vmatpush1.msra.mxu0 %v652
      %724 = vmatprep.subr.mxu0 0.0
      %725 = vmatpush1.msra.mxu0 %v653
      %726 = vmatprep.subr.mxu0 0.0
      %727 = vmatpush1.msra.mxu0 %v654
      %728 = vmatprep.subr.mxu0 0.0
      %729 = vmatpush1.msra.mxu0 %v655
      %730 = vmatprep.subr.mxu0 0.0
      %731 = vmatpush1.msra.mxu0 %v656
      %732 = vmatprep.subr.mxu0 0.0
      %733 = vmatpush1.msra.mxu0 %v657
      %734 = vmatprep.subr.mxu0 0.0
      %735 = vmatpush1.msra.mxu0 %v658
      %736 = vmatprep.subr.mxu0 0.0
      %737 = vmatpush1.msra.mxu0 %v659
      %738 = vmatprep.subr.mxu0 0.0
      %739 = vmatpush1.msra.mxu0 %v660
      %740 = vmatprep.subr.mxu0 0.0
      %741 = vmatpush1.msra.mxu0 %v661
      %742 = vmatprep.subr.mxu0 0.0
      %743 = vmatpush1.msra.mxu0 %v662
      %744 = vmatprep.subr.mxu0 0.0
      %745 = vmatpush1.msra.mxu0 %v663
      %746 = vmatprep.subr.mxu0 0.0
      %747 = vmatpush1.msra.mxu0 %v664
      %748 = vmatprep.subr.mxu0 0.0
      %749 = vmatpush1.msra.mxu0 %v665
      %750 = vmatprep.subr.mxu0 0.0
      %751 = vmatpush1.msra.mxu0 %v666
      %752 = vmatprep.subr.mxu0 0.0
      %753 = vmatpush1.msra.mxu0 %v667
      %754 = vmatprep.subr.mxu0 0.0
      %755 = vmatpush1.msra.mxu0 %v668
      %756 = vmatprep.mubr.f32.mxu0 %v619
      %757 = vmatmul.mubr.f32.gmra.mrb[0].mxu0 %v610
      %v758 = vpop.f32.mrb[0].mxu0
      %v759 = vadd.f32 %v690, %v758
      %v760 = vpop.f32.mrb[0].mxu0
      %761 = vmatprep.mubr.f32.mxu0 %v620
      %762 = vmatmul.mubr.f32.gmra.mrb[0].mxu0 %v611
      %v763 = vpop.f32.mrb[0].mxu0
      %v764 = vadd.f32 %v690, %v763
      %v765 = vpop.f32.mrb[0].mxu0
      %766 = vmatprep.mubr.f32.mxu0 %v621
      %767 = vmatmul.mubr.f32.gmra.mrb[0].mxu0 %v612
      %v768 = vpop.f32.mrb[0].mxu0
      %v769 = vadd.f32 %v690, %v768
      %v770 = vpop.f32.mrb[0].mxu0
      %771 = vmatprep.mubr.f32.mxu0 %v622
      %772 = vmatmul.mubr.f32.gmra.mrb[0].mxu0 %v613
      %v773 = vpop.f32.mrb[0].mxu0
      %v774 = vadd.f32 %v690, %v773
      %v775 = vpop.f32.mrb[0].mxu0
      %776 = vmatprep.mubr.f32.mxu0 %v623
      %777 = vmatmul.mubr.f32.gmra.mrb[0].mxu0 %v614
      %v778 = vpop.f32.mrb[0].mxu0
      %v779 = vadd.f32 %v690, %v778
      %v780 = vpop.f32.mrb[0].mxu0
      %781 = vmatprep.mubr.f32.mxu0 %v624
      %782 = vmatmul.mubr.f32.gmra.mrb[0].mxu0 %v615
      %v783 = vpop.f32.mrb[0].mxu0
      %v784 = vadd.f32 %v690, %v783
      %v785 = vpop.f32.mrb[0].mxu0
      %786 = vmatprep.mubr.f32.mxu0 %v625
      %787 = vmatmul.mubr.f32.gmra.mrb[0].mxu0 %v616
      %v788 = vpop.f32.mrb[0].mxu0
      %v789 = vadd.f32 %v690, %v788
      %v790 = vpop.f32.mrb[0].mxu0
      %791 = vmatprep.mubr.f32.mxu0 %v626
      %792 = vmatmul.mubr.f32.gmra.mrb[0].mxu0 %v617
      %v793 = vpop.f32.mrb[0].mxu0
      %v794 = vadd.f32 %v690, %v793
      %v795 = vpop.f32.mrb[0].mxu0
      %796 = vmatprep.mubr.f32.mxu0 %v627
      %797 = vmatmul.mubr.f32.gmra.mrb[0].mxu0 %v618
      %v798 = vpop.f32.mrb[0].mxu0
      %v799 = vadd.f32 %v690, %v798
      %v800 = vpop.f32.mrb[0].mxu0
      %801 = vdwg.mxu0
      %802 = vmatprep.subr.mxu0 0.0
      %803 = vmatpush1.msra.mxu0 %v669
      %804 = vmatprep.subr.mxu0 0.0
      %805 = vmatpush1.msra.mxu0 %v670
      %806 = vmatprep.subr.mxu0 0.0
      %807 = vmatpush1.msra.mxu0 %v671
      %808 = vmatprep.subr.mxu0 0.0
      %809 = vmatpush1.msra.mxu0 %v672
      %810 = vmatprep.subr.mxu0 0.0
      %811 = vmatpush1.msra.mxu0 %v673
      %812 = vmatprep.subr.mxu0 0.0
      %813 = vmatpush1.msra.mxu0 %v674
      %814 = vmatprep.subr.mxu0 0.0
      %815 = vmatpush1.msra.mxu0 %v675
      %816 = vmatprep.subr.mxu0 0.0
      %817 = vmatpush1.msra.mxu0 %v676
      %818 = vmatprep.subr.mxu0 0.0
      %819 = vmatpush1.msra.mxu0 %v677
      %820 = vmatprep.subr.mxu0 0.0
      %821 = vmatpush1.msra.mxu0 %v678
      %822 = vmatprep.subr.mxu0 0.0
      %823 = vmatpush1.msra.mxu0 %v679
      %824 = vmatprep.subr.mxu0 0.0
      %825 = vmatpush1.msra.mxu0 %v680
      %826 = vmatprep.subr.mxu0 0.0
      %827 = vmatpush1.msra.mxu0 %v681
      %828 = vmatprep.subr.mxu0 0.0
      %829 = vmatpush1.msra.mxu0 %v682
      %830 = vmatprep.subr.mxu0 0.0
      %831 = vmatpush1.msra.mxu0 %v683
      %832 = vmatprep.subr.mxu0 0.0
      %833 = vmatpush1.msra.mxu0 %v684
      %834 = vmatprep.subr.mxu0 0.0
      %835 = vmatpush1.msra.mxu0 0.0
      %836 = vmatprep.subr.mxu0 0.0
      %837 = vmatpush1.msra.mxu0 0.0
      %838 = vmatprep.subr.mxu0 0.0
      %839 = vmatpush1.msra.mxu0 0.0
      %840 = vmatprep.subr.mxu0 0.0
      %841 = vmatpush1.msra.mxu0 0.0
      %842 = vmatprep.subr.mxu0 0.0
      %843 = vmatpush1.msra.mxu0 0.0
      %844 = vmatprep.subr.mxu0 0.0
      %845 = vmatpush1.msra.mxu0 0.0
      %846 = vmatprep.subr.mxu0 0.0
      %847 = vmatpush1.msra.mxu0 0.0
      %848 = vmatprep.subr.mxu0 0.0
      %849 = vmatpush1.msra.mxu0 0.0
      %850 = vmatprep.subr.mxu0 0.0
      %851 = vmatpush1.msra.mxu0 0.0
      %852 = vmatprep.subr.mxu0 0.0
      %853 = vmatpush1.msra.mxu0 0.0
      %854 = vmatprep.subr.mxu0 0.0
      %855 = vmatpush1.msra.mxu0 0.0
      %856 = vmatprep.subr.mxu0 0.0
      %857 = vmatpush1.msra.mxu0 0.0
      %858 = vmatprep.subr.mxu0 0.0
      %859 = vmatpush1.msra.mxu0 0.0
      %860 = vmatprep.subr.mxu0 0.0
      %861 = vmatpush1.msra.mxu0 0.0
      %862 = vmatprep.subr.mxu0 0.0
      %863 = vmatpush1.msra.mxu0 0.0
      %864 = vmatprep.subr.mxu0 0.0
      %865 = vmatpush1.msra.mxu0 0.0
      %866 = vmatprep.mubr.f32.mxu0 0.0
      %867 = vmatmul.mubr.f32.gmra.mrb[0].mxu0 %v628
      %v868 = vpop.f32.mrb[0].mxu0
      %v869 = vadd.f32 %v759, %v868
      %v870 = vpop.f32.mrb[0].mxu0
      %871 = vmatprep.mubr.f32.mxu0 0.0
      %872 = vmatmul.mubr.f32.gmra.mrb[0].mxu0 %v629
      %v873 = vpop.f32.mrb[0].mxu0
      %v874 = vadd.f32 %v764, %v873
      %v875 = vpop.f32.mrb[0].mxu0
      %876 = vmatprep.mubr.f32.mxu0 0.0
      %877 = vmatmul.mubr.f32.gmra.mrb[0].mxu0 %v630
      %v878 = vpop.f32.mrb[0].mxu0
      %v879 = vadd.f32 %v769, %v878
      %v880 = vpop.f32.mrb[0].mxu0
      %881 = vmatprep.mubr.f32.mxu0 0.0
      %882 = vmatmul.mubr.f32.gmra.mrb[0].mxu0 %v631
      %v883 = vpop.f32.mrb[0].mxu0
      %v884 = vadd.f32 %v774, %v883
      %v885 = vpop.f32.mrb[0].mxu0
      %886 = vmatprep.mubr.f32.mxu0 0.0
      %887 = vmatmul.mubr.f32.gmra.mrb[0].mxu0 %v632
      %v888 = vpop.f32.mrb[0].mxu0
      %v889 = vadd.f32 %v779, %v888
      %v890 = vpop.f32.mrb[0].mxu0
      %891 = vmatprep.mubr.f32.mxu0 0.0
      %892 = vmatmul.mubr.f32.gmra.mrb[0].mxu0 %v633
      %v893 = vpop.f32.mrb[0].mxu0
      %v894 = vadd.f32 %v784, %v893
      %v895 = vpop.f32.mrb[0].mxu0
      %896 = vmatprep.mubr.f32.mxu0 0.0
      %897 = vmatmul.mubr.f32.gmra.mrb[0].mxu0 %v634
      %v898 = vpop.f32.mrb[0].mxu0
      %v899 = vadd.f32 %v789, %v898
      %v900 = vpop.f32.mrb[0].mxu0
      %901 = vmatprep.mubr.f32.mxu0 0.0
      %902 = vmatmul.mubr.f32.gmra.mrb[0].mxu0 %v635
      %v903 = vpop.f32.mrb[0].mxu0
      %v904 = vadd.f32 %v794, %v903
      %v905 = vpop.f32.mrb[0].mxu0
      %906 = vmatprep.mubr.f32.mxu0 0.0
      %907 = vmatmul.mubr.f32.gmra.mrb[0].mxu0 %v636
      %v908 = vpop.f32.mrb[0].mxu0
      %v909 = vadd.f32 %v799, %v908
      %v910 = vpop.f32.mrb[0].mxu0
      %911 = vdwg.mxu0
      %v912 = vmax.f32 %v869, 0.0
      %v913 = vmax.f32 %v874, 0.0
      %v914 = vmax.f32 %v879, 0.0
      %v915 = vmax.f32 %v884, 0.0
      %v916 = vmax.f32 %v889, 0.0
      %v917 = vmax.f32 %v894, 0.0
      %v918 = vmax.f32 %v899, 0.0
      %v919 = vmax.f32 %v904, 0.0
      %v920 = vmax.f32 %v909, 0.0
      %921 = vst [vmem:[%s231] sm:$0xff] %v912
      %922 = vst [vmem:[%s231 + $0x8] sm:$0xff] %v913
      %s923 = scalar_lea.vmem %s231, 16
      %924 = vst [vmem:[%s923 - $0x2] sm:$0xfc] %v914
      %925 = vst [vmem:[%s923 + $0x6] sm:$0xff] %v915
      %926 = vst [vmem:[%s923 + $0xe] sm:$0x3] %v916
      %s927 = scalar_lea.vmem %s231, 32
      %928 = vst [vmem:[%s927 - $0x4] sm:$0xf0] %v916
      %929 = vst [vmem:[%s927 + $0x4] sm:$0xff] %v917
      %930 = vst [vmem:[%s927 + $0xc] sm:$0xf] %v918
      %s931 = scalar_lea.vmem %s231, 48
      %932 = vst [vmem:[%s931 - $0x6] sm:$0xc0] %v918
      %933 = vst [vmem:[%s931 + $0x2] sm:$0xff] %v919
      %934 = vst [vmem:[%s931 + $0xa] sm:$0x3f] %v920
      %s935 = smul.u32 4, %s16
      %p936 = scmp.lt.s32.totalorder %s935, 7
      %s937 = scalar_select %p936, %s935, 7
      %s938 = smul.addr %s937, 2
      %s939 = smul.addr %s938, 8
      %s940 = scalar_lea.vmem %s5, %s939
      // Predicated region
      $region41: #{contracting_stack_forward.1} parent=39 // pred_check
        %p941 = pneg %p144
      $region42: #{contracting_stack_forward.1} parent=39 // pred_check_branch
        %943 = sbr.rel (%p941) target = $region44
      $region43: #{contracting_stack_forward.1} parent=39 // pred_region
        %s944 = smul.u32 4, %s16
      $region44: #{contracting_stack_forward.1} parent=39 // pred_fallthru
        _
    $region40: #{contracting_stack_forward.1} parent=5 // pred_fallthru
      _
    %p945 = scmp.le.s32.totalorder 2, %s11
    // Predicated region
    $region45: #{contracting_stack_forward.1} parent=5 // pred_check
      %p946 = pneg %p945
    $region46: #{contracting_stack_forward.1} parent=5 // pred_check_branch
      %948 = sbr.rel (%p946) target = $region48
    $region47: #{contracting_stack_forward.1} parent=5 // pred_region
      %s949 = ssub.s32 %s11, 2
      // Predicated region
      $region49: #{contracting_stack_forward.1} parent=47 // pred_check
        %p950 = pneg %p150
      $region50: #{contracting_stack_forward.1} parent=47 // pred_check_branch
        %952 = sbr.rel (%p950) target = $region52
      $region51: #{contracting_stack_forward.1} parent=47 // pred_region
        %s953 = smul.u32 4, %s17
        %p954 = scmp.lt.s32.totalorder %s953, 7
        %s955 = scalar_select %p954, %s953, 7
        %s956 = smul.addr %s955, 2
        %s957 = smul.addr %s956, 8
        %s958 = scalar_lea.vmem %s5, %s957
      $region52: #{contracting_stack_forward.1} parent=47 // pred_fallthru
        _
    $region48: #{contracting_stack_forward.1} parent=5 // pred_fallthru
      _
  $region6: #{contracting_stack_forward.1} parent=0 // loop_footer
    %s15 = sadd.s32 1, %s11
  $region7: #{contracting_stack_forward.1} parent=0 // loop_footer_branch
    %10 = sbr.rel target = $region3
  $region8: #{contracting_stack_forward.1} parent=0 // loop_exit
    _

</llo_original>
